<compile_context>
chip_gen: v5e
topology: v5e:2x2
jax: 0.10.0
libtpu: 0.0.40
codegen_flags: <defaults>
</compile_context>

<pallas_src>
import jax
import jax.numpy as jnp
from jax.experimental import pallas as pl
from jax.experimental.pallas import tpu as pltpu


def _cdiv(a, b):
    return -(-a // b)


def _choose_tiling(B, Cin, P, itemsize, tb=None, tp=None):
    """Pick (tb, tp, padded P, #P-steps, vmem_limit) from the hardware."""
    try:
        vmem_cap = int(pltpu.get_tpu_info().vmem_capacity_bytes)
    except Exception:                      # pragma: no cover - fallback: assume v7x (64 MiB)
        vmem_cap = 64 << 20
    vmem_limit = int(min(vmem_cap * 3 // 4, 96 << 20))   # 48 MiB on v7x, 96 MiB on v5e/v6e
    x_buf_budget = vmem_cap // 6                          # one of the two x pipeline buffers

    def tiles(r, c):                                      # number of (8,128) tiles of a 2-D slice
        return _cdiv(r, 8) * _cdiv(c, 128)

    def row_cost(tile_p):
        # Per-batch-row VMEM bytes of one pipeline buffer:
        #   x tile (native dtype) + ~4 sublane-padded (1,tile_p) f32 score-path
        #   arrays + ~6 (1,Cin)/(1,1)-shaped small tiles (gwo/out/acc/denoms).
        return (Cin * tile_p * itemsize
                + 4 * tiles(1, tile_p) * 4096
                + 6 * tiles(1, max(Cin, 1)) * 4096)

    # ---------- pixel (P) tile ----------
    if tp is not None:
        tile_p = P if tp >= P else max(128, (tp // 128) * 128)
    elif row_cost(P) <= x_buf_budget:
        tile_p = P                        # whole rows stream: no P padding, no masking
    else:
        tile_p = 4096                     # P-reduction path: keep >= 8 batch rows per buffer
        while tile_p > 128 and 8 * row_cost(tile_p) > x_buf_budget:
            tile_p //= 2

    if tile_p >= P:
        tile_p, Pp, n_p = P, P, 1
    else:
        n_p = _cdiv(P, tile_p)
        Pp = n_p * tile_p                 # tp must divide the padded extent

    # ---------- batch tile ----------
    tb_max = max(1, x_buf_budget // row_cost(tile_p))
    if tb is None:
        if B >= 16:
            min_steps = 4                 # several batch blocks per TensorCore (v7x megacore)
        elif B >= 2:
            min_steps = 2                 # at least one block per TensorCore
        else:
            min_steps = 1
        n_b = max(min_steps, _cdiv(B, min(tb_max, 1024)))
        tb = _cdiv(B, n_b)                # minimizes the ragged tail
    tb = max(1, min(int(tb), B))
    return tb, tile_p, Pp, n_p, vmem_limit


def _make_kernel(cin, tile_p, p_valid, n_p):
    """Kernel closure over static sizes. Masks padded lanes only when needed."""
    need_mask = (n_p * tile_p) != p_valid
    single_p = (n_p == 1)

    def softplus(s):
        # torch.nn.functional.softplus defaults: beta=1, threshold=20
        return jnp.where(s > 20.0, s, jnp.log1p(jnp.exp(jnp.minimum(s, 20.0))))

    def kernel(x_ref, gwo_ref, out_ref, wts_ref, den_ref, acc_sc, den_sc):
        k = pl.program_id(1)

        x = x_ref[...]                                    # (tb, Cin, tp)  native dtype
        gwo = gwo_ref[...]                                # (tb, 1, Cin+1) f32 (folded gW | g.b)
        gw = gwo[:, :, :cin].astype(x.dtype)              # cast the *tiny* operand, not x
        off = gwo[:, :, cin:cin + 1]                      # (tb, 1, 1) f32

        # score[t,0,p] = sum_c (g^T W)[t,c] * x[t,c,p] + (g^T b)[t]
        score = jax.lax.dot_general(
            gw, x,
            dimension_numbers=(((2,), (1,)), ((0,), (0,))),
            preferred_element_type=jnp.float32) + off      # (tb, 1, tp) f32

        sp = softplus(score)
        if need_mask:
            lane = jax.lax.broadcasted_iota(jnp.int32, sp.shape, 2) + k * tile_p
            sp = jnp.where(lane < p_valid, sp, 0.0)

        part_den = jnp.sum(sp, axis=-1, keepdims=True)     # (tb, 1, 1) f32

        if single_p:
            den = part_den + 1e-4
            wts = sp / den                                 # normalized attention weights
            wts_ref[...] = wts.astype(wts_ref.dtype)
            # out[t,0,c] = sum_p wts[t,0,p] * x[t,c,p]; NT matmul (contract minor
            # dims of both), same pattern as flash-attention q @ k^T -> no
            # materialized transpose of the big x tile, f32 accumulation on MXU.
            pooled = jax.lax.dot_general(
                wts.astype(x.dtype), x,
                dimension_numbers=(((2,), (2,)), ((0,), (0,))),
                preferred_element_type=jnp.float32)        # (tb, 1, Cin)
            out_ref[...] = pooled.astype(out_ref.dtype)
            den_ref[...] = den.astype(den_ref.dtype)
        else:
            @pl.when(k == 0)
            def _():
                acc_sc[...] = jnp.zeros_like(acc_sc)
                den_sc[...] = jnp.zeros_like(den_sc)

            # Un-normalized weights for this P tile; the wrapper rescales them
            # by the returned denominator (single cheap XLA op).
            wts_ref[...] = sp.astype(wts_ref.dtype)
            acc_sc[...] += jax.lax.dot_general(
                sp.astype(x.dtype), x,
                dimension_numbers=(((2,), (2,)), ((0,), (0,))),
                preferred_element_type=jnp.float32)        # (tb, 1, Cin)
            den_sc[...] += part_den

            @pl.when(k == pl.num_programs(1) - 1)
            def _():
                den = den_sc[...] + 1e-4
                out_ref[...] = (acc_sc[...] / den).astype(out_ref.dtype)
                den_ref[...] = den.astype(den_ref.dtype)

    return kernel


def attention_linear(x, g, conv_w, conv_b, *, tb=None, tp=None):
    """x: (B,Cin,H,W), g: (B,Cout), conv_w: (Cout,Cin,1,1), conv_b: (Cout,)."""
    B, Cin, H, Wd = x.shape
    Cout = conv_w.shape[0]
    P = H * Wd
    xdt = x.dtype

    # Fold the 1x1 conv out of the kernel:  score = g^T (W x + b) = (g^T W) x + (g^T b).
    W2 = conv_w.reshape(Cout, Cin).astype(jnp.float32)
    b1 = conv_b.reshape(Cout, 1).astype(jnp.float32)
    g2 = g.reshape(B, Cout).astype(jnp.float32)
    gW = g2 @ W2                                           # (B, Cin)
    off = g2 @ b1                                          # (B, 1)
    gwo = jnp.concatenate([gW, off], axis=1).reshape(B, 1, Cin + 1)

    x_flat = x.reshape(B, Cin, P)                          # free reshape; x stays native dtype

    tb_, tp_, Pp, n_p, vmem_limit = _choose_tiling(
        B, Cin, P, x_flat.dtype.itemsize, tb=tb, tp=tp)

    if Pp != P:
        # Only the P-tiled path ever pads (tp must divide the padded extent).
        x_flat = jnp.pad(x_flat, ((0, 0), (0, 0), (0, Pp - P)))

    n_b = _cdiv(B, tb_)
    kernel = _make_kernel(Cin, tp_, P, n_p)

    out3, wts3, den3 = pl.pallas_call(
        kernel,
        out_shape=(
            jax.ShapeDtypeStruct((B, 1, Cin), xdt),        # pooled features
            jax.ShapeDtypeStruct((B, 1, Pp), xdt),         # attention weights
            jax.ShapeDtypeStruct((B, 1, 1), jnp.float32),  # softplus denominator
        ),
        grid_spec=pltpu.PrefetchScalarGridSpec(
            num_scalar_prefetch=0,
            grid=(n_b, n_p),
            in_specs=[
                pl.BlockSpec((tb_, Cin, tp_), lambda b, k: (b, 0, k)),    # streamed x
                pl.BlockSpec((tb_, 1, Cin + 1), lambda b, k: (b, 0, 0)),  # gW|g.b (re-fetch skipped over k)
            ],
            out_specs=[
                pl.BlockSpec((tb_, 1, Cin), lambda b, k: (b, 0, 0)),
                pl.BlockSpec((tb_, 1, tp_), lambda b, k: (b, 0, k)),
                pl.BlockSpec((tb_, 1, 1), lambda b, k: (b, 0, 0)),
            ],
            scratch_shapes=[
                pltpu.VMEM((tb_, 1, Cin), jnp.float32),    # pooled-feature accumulator
                pltpu.VMEM((tb_, 1, 1), jnp.float32),      # denominator accumulator
            ],
        ),
        compiler_params=pltpu.CompilerParams(
            dimension_semantics=("parallel", "arbitrary"),  # batch sharded over v7x's 2 TCs
            vmem_limit_bytes=vmem_limit,
        ),
    )(x_flat, gwo)

    final_output = out3[:, 0, :]                           # (B, Cin), x.dtype
    if n_p == 1:
        weights = wts3[:, 0, :]                            # already normalized in-kernel
    else:
        weights = wts3[:, 0, :P] / den3[:, 0, :]           # normalize + drop P padding
    # TODO(synk): PyTorch returns the weights via .data.cpu().numpy(); we return a
    # device array (host transfer has no Pallas equivalent).
    return final_output, weights.reshape(B, H, Wd).astype(xdt)


def _reference(x, g, conv_w, conv_b):
    # Pure-JAX reference mirroring the PyTorch forward.
    B, Cin, H, Wd = x.shape
    Cout = conv_w.shape[0]
    P = H * Wd
    xr = x.reshape(B, Cin, P)
    W2 = conv_w.reshape(Cout, Cin)
    changed = jnp.einsum("oc,bcp->bop", W2, xr) + conv_b[None, :, None]
    score = jnp.einsum("bop,bo->bp", changed, g)
    sp = jnp.where(score > 20.0, score, jnp.log1p(jnp.exp(jnp.minimum(score, 20.0))))
    wts = sp / (jnp.sum(sp, axis=1, keepdims=True) + 1e-4)
    final = jnp.einsum("bcp,bp->bc", xr, wts)
    return final, wts.reshape(B, H, Wd)


if __name__ == "__main__":
    key = jax.random.PRNGKey(0)
    kx, kg, kw, kb, kx2, kg2, kx3, kg3 = jax.random.split(key, 8)

    B, Cin, Cout, H, Wd = 2, 4, 8, 16, 16
    x = jax.random.normal(kx, (B, Cin, H, Wd), dtype=jnp.float32)
    g = jax.random.normal(kg, (B, Cout), dtype=jnp.float32)
    conv_w = 0.1 * jax.random.normal(kw, (Cout, Cin, 1, 1), dtype=jnp.float32)
    conv_b = 0.1 * jax.random.normal(kb, (Cout,), dtype=jnp.float32)

    # Case 1: 128-aligned P, batch split into 2 "parallel" steps.
    out1, w1 = attention_linear(x, g, conv_w, conv_b)
    jax.block_until_ready((out1, w1))
    r_out1, r_w1 = _reference(x, g, conv_w, conv_b)
    assert jnp.allclose(out1, r_out1, atol=1e-4, rtol=1e-4)
    assert jnp.allclose(w1, r_w1, atol=1e-5, rtol=1e-4)

    # Case 2: non-128-aligned P (full-row blocks, no padding) + ragged batch blocks (B=3, tb=2).
    B2, H2, W2d = 3, 10, 10
    x2 = jax.random.normal(kx2, (B2, Cin, H2, W2d), dtype=jnp.float32)
    g2 = jax.random.normal(kg2, (B2, Cout), dtype=jnp.float32)
    out2, w2 = attention_linear(x2, g2, conv_w, conv_b)
    jax.block_until_ready((out2, w2))
    r_out2, r_w2 = _reference(x2, g2, conv_w, conv_b)
    assert jnp.allclose(out2, r_out2, atol=1e-4, rtol=1e-4)
    assert jnp.allclose(w2, r_w2, atol=1e-5, rtol=1e-4)

    # Case 3: force the P-tiled reduction path (P=200, tp=128 -> 2 P steps with
    # masked/padded lanes, f32 accumulators, weights normalized in the wrapper).
    B3, H3, W3d = 5, 10, 20
    x3 = jax.random.normal(kx3, (B3, Cin, H3, W3d), dtype=jnp.float32)
    g3 = jax.random.normal(kg3, (B3, Cout), dtype=jnp.float32)
    out3, w3 = attention_linear(x3, g3, conv_w, conv_b, tp=128)
    jax.block_until_ready((out3, w3))
    r_out3, r_w3 = _reference(x3, g3, conv_w, conv_b)
    assert jnp.allclose(out3, r_out3, atol=1e-4, rtol=1e-4)
    assert jnp.allclose(w3, r_w3, atol=1e-5, rtol=1e-4)

    print("KERNEL_OK")
</pallas_src>

<mosaic_0001>
module attributes {stable_mosaic.version = 11 : i64} {
  func.func @kernel(%arg0: i32, %arg1: i32, %arg2: memref<1x4x256xf32, #tpu.memory_space<vmem>>, %arg3: memref<1x1x5xf32, #tpu.memory_space<vmem>>, %arg4: memref<1x1x4xf32, #tpu.memory_space<vmem>>, %arg5: memref<1x1x256xf32, #tpu.memory_space<vmem>>, %arg6: memref<1x1x1xf32, #tpu.memory_space<vmem>>, %arg7: memref<1x1x4xf32, #tpu.memory_space<vmem>>, %arg8: memref<1x1x1xf32, #tpu.memory_space<vmem>>) attributes {dimension_semantics = [#tpu.dimension_semantics<parallel>, #tpu.dimension_semantics<arbitrary>], iteration_bounds = array<i64: 2, 1>, scalar_prefetch = 0 : i64, scratch_operands = 2 : i64, tpu.core_type = #tpu.core_type<tc>, window_params = [{transform_indices = @transform_0, window_bounds = array<i64: 1, 4, 256>}, {transform_indices = @transform_1, window_bounds = array<i64: 1, 1, 5>}, {transform_indices = @transform_2, window_bounds = array<i64: 1, 1, 4>}, {transform_indices = @transform_3, window_bounds = array<i64: 1, 1, 256>}, {transform_indices = @transform_4, window_bounds = array<i64: 1, 1, 1>}]} {
    %c0 = arith.constant 0 : index
    %c0_0 = arith.constant 0 : index
    %c0_1 = arith.constant 0 : index
    %0 = vector.load %arg2[%c0, %c0_0, %c0_1] : memref<1x4x256xf32, #tpu.memory_space<vmem>>, vector<1x4x256xf32>
    %c0_2 = arith.constant 0 : index
    %c0_3 = arith.constant 0 : index
    %c0_4 = arith.constant 0 : index
    %1 = vector.load %arg3[%c0_2, %c0_3, %c0_4] : memref<1x1x5xf32, #tpu.memory_space<vmem>>, vector<1x1x5xf32>
    %2 = vector.extract_strided_slice %1 {offsets = [0, 0, 0], sizes = [1, 1, 4], strides = [1, 1, 1]} : vector<1x1x5xf32> to vector<1x1x4xf32>
    %3 = vector.extract_strided_slice %1 {offsets = [0, 0, 4], sizes = [1, 1, 1], strides = [1, 1, 1]} : vector<1x1x5xf32> to vector<1x1x1xf32>
    %cst = arith.constant dense<0.000000e+00> : vector<1x1x256xf32>
    %4 = tpu.matmul %2, %0, %cst {dimension_numbers = #tpu.dot_dimension_numbers<[2], [1], [1], [2], [0, 0, 0, 1, 1, 2], [0], [0]>} : vector<1x1x4xf32>, vector<1x4x256xf32>, vector<1x1x256xf32> -> vector<1x1x256xf32>
    %5 = vector.broadcast %3 : vector<1x1x1xf32> to vector<1x1x256xf32>
    %6 = arith.addf %4, %5 : vector<1x1x256xf32>
    %cst_5 = arith.constant 2.000000e+01 : f32
    %7 = vector.broadcast %cst_5 : f32 to vector<1x1x256xf32>
    %8 = arith.cmpf ogt, %6, %7 : vector<1x1x256xf32>
    %cst_6 = arith.constant 2.000000e+01 : f32
    %9 = vector.broadcast %cst_6 : f32 to vector<1x1x256xf32>
    %10 = arith.minimumf %6, %9 : vector<1x1x256xf32>
    %11 = math.exp %10 : vector<1x1x256xf32>
    %12 = math.log1p %11 : vector<1x1x256xf32>
    %13 = arith.select %8, %6, %12 : vector<1x1x256xi1>, vector<1x1x256xf32>
    %cst_7 = arith.constant dense<0.000000e+00> : vector<1x1xf32>
    %14 = vector.multi_reduction <add>, %13, %cst_7 [2] : vector<1x1x256xf32> to vector<1x1xf32>
    %15 = vector.shape_cast %14 : vector<1x1xf32> to vector<1x1x1xf32>
    %cst_8 = arith.constant 9.99999974E-5 : f32
    %16 = vector.broadcast %cst_8 : f32 to vector<1x1x1xf32>
    %17 = arith.addf %15, %16 : vector<1x1x1xf32>
    %18 = vector.broadcast %17 : vector<1x1x1xf32> to vector<1x1x256xf32>
    %19 = arith.divf %13, %18 : vector<1x1x256xf32>
    %c0_9 = arith.constant 0 : index
    %c0_10 = arith.constant 0 : index
    %c0_11 = arith.constant 0 : index
    %20 = vector.load %arg5[%c0_9, %c0_10, %c0_11] : memref<1x1x256xf32, #tpu.memory_space<vmem>>, vector<1x1x256xf32>
    tpu.vector_store %arg5[%c0_9, %c0_10, %c0_11], %19 {strides = array<i32>} : memref<1x1x256xf32, #tpu.memory_space<vmem>>, vector<1x1x256xf32>,
    %cst_12 = arith.constant dense<0.000000e+00> : vector<1x1x4xf32>
    %21 = tpu.matmul %19, %0, %cst_12 {dimension_numbers = #tpu.dot_dimension_numbers<[2], [2], [1], [1], [0, 0, 0, 1, 1, 1], [0], [0]>} : vector<1x1x256xf32>, vector<1x4x256xf32>, vector<1x1x4xf32> -> vector<1x1x4xf32>
    %c0_13 = arith.constant 0 : index
    %c0_14 = arith.constant 0 : index
    %c0_15 = arith.constant 0 : index
    %22 = vector.load %arg4[%c0_13, %c0_14, %c0_15] : memref<1x1x4xf32, #tpu.memory_space<vmem>>, vector<1x1x4xf32>
    tpu.vector_store %arg4[%c0_13, %c0_14, %c0_15], %21 {strides = array<i32>} : memref<1x1x4xf32, #tpu.memory_space<vmem>>, vector<1x1x4xf32>,
    %c0_16 = arith.constant 0 : index
    %c0_17 = arith.constant 0 : index
    %c0_18 = arith.constant 0 : index
    %23 = vector.load %arg6[%c0_16, %c0_17, %c0_18] : memref<1x1x1xf32, #tpu.memory_space<vmem>>, vector<1x1x1xf32>
    tpu.vector_store %arg6[%c0_16, %c0_17, %c0_18], %17 {strides = array<i32>} : memref<1x1x1xf32, #tpu.memory_space<vmem>>, vector<1x1x1xf32>,
    return
  }
  func.func @transform_0(%arg0: i32, %arg1: i32) -> (i32, i32, i32) {
    %c0_i32 = arith.constant 0 : i32
    %c0_i32_0 = arith.constant 0 : i32
    return %arg0, %c0_i32, %arg1 : i32, i32, i32
  }
  func.func @transform_1(%arg0: i32, %arg1: i32) -> (i32, i32, i32) {
    %c0_i32 = arith.constant 0 : i32
    %c0_i32_0 = arith.constant 0 : i32
    %c0_i32_1 = arith.constant 0 : i32
    return %arg0, %c0_i32, %c0_i32_0 : i32, i32, i32
  }
  func.func @transform_2(%arg0: i32, %arg1: i32) -> (i32, i32, i32) {
    %c0_i32 = arith.constant 0 : i32
    %c0_i32_0 = arith.constant 0 : i32
    %c0_i32_1 = arith.constant 0 : i32
    return %arg0, %c0_i32, %c0_i32_0 : i32, i32, i32
  }
  func.func @transform_3(%arg0: i32, %arg1: i32) -> (i32, i32, i32) {
    %c0_i32 = arith.constant 0 : i32
    %c0_i32_0 = arith.constant 0 : i32
    return %arg0, %c0_i32, %arg1 : i32, i32, i32
  }
  func.func @transform_4(%arg0: i32, %arg1: i32) -> (i32, i32, i32) {
    %c0_i32 = arith.constant 0 : i32
    %c0_i32_0 = arith.constant 0 : i32
    %c0_i32_1 = arith.constant 0 : i32
    return %arg0, %c0_i32, %c0_i32_0 : i32, i32, i32
  }
}

</mosaic_0001>

<llo_original>
// kernel: tpu_custom_call.1
$region0: #{tpu_custom_call.1}
  #allocation0 [shape = 'u32[]', space=smem, size = 0x4, offset = 0x4, fixed_abs, tag = 'smem constant byte address 0x4 - core index']
  #allocation1 [shape = 'u32[72,128]{1,0:T(1,128)}', space=vmem, size = 0x9000, scoped, tag = 'internal scratch']
  #allocation2 [shape = 'f32[1,1,4]{2,1,0:T(1,128)}', space=vmem, size = 0x200, scoped, tag = 'scratch operand']
  #allocation3 [shape = 'f32[1,1,1]{2,1,0:T(1,128)}', space=vmem, size = 0x200, scoped, tag = 'scratch operand']
  %s0 = inlined_call_operand.hbm [shape: f32[2,4,256], index: 0, kind: input, shape index: {}]
  %s1 = inlined_call_operand.hbm [shape: f32[2,1,5], index: 1, kind: input, shape index: {}]
  %s2 = inlined_call_operand.hbm [shape: f32[2,1,4], index: 2, kind: output, shape index: {0}]
  %s3 = inlined_call_operand.hbm [shape: f32[2,1,256], index: 3, kind: output, shape index: {1}]
  %s4 = inlined_call_operand.vmem [shape: f32[2,1,1], index: 4, kind: output, shape index: {2}]
  %5 = xla_tuple %s2, %s3, %s4
  %s6 = sld [smem:[#allocation0]]
  $region65: #{tpu_custom_call.1} parent=0
    _
  %s8 = ssub.s32 1, %s6
  %s9 = scalar_select 0, %s8, %s6
  $region1: #{tpu_custom_call.1} parent=0
    #allocation4 [shape = 'u8[8192]{0}', space=vmem, size = 0x2000, scoped, tag = 'input window, operand 0']
    #allocation5 [shape = 's32[2]{0}', space=sflag, size = 0x8, scoped, tag = 'scoped memory for tpu_custom_call.1']
    #allocation6 [shape = 's32[2]{0}', space=sflag, size = 0x8, scoped, tag = 'scoped memory for tpu_custom_call.1']
    #allocation7 [shape = 'u8[1024]{0}', space=vmem, size = 0x400, scoped, tag = 'input window, operand 1']
    #allocation8 [shape = 's32[2]{0}', space=sflag, size = 0x8, scoped, tag = 'scoped memory for tpu_custom_call.1']
    #allocation9 [shape = 'u8[1024]{0}', space=vmem, size = 0x400, scoped, tag = 'output window, operand 0']
    #allocation10 [shape = 'u8[2048]{0}', space=vmem, size = 0x800, scoped, tag = 'output window, operand 1']
    #allocation11 [shape = 's32[2]{0}', space=sflag, size = 0x8, scoped, tag = 'scoped memory for tpu_custom_call.1']
    %10 = vsyncpa [#allocation5], 0
    %s11 = scalar_lea.sflag [#allocation5], 1
    %12 = vsyncpa %s11, 0
    %13 = vsyncpa [#allocation8], 0
    %s14 = scalar_lea.sflag [#allocation8], 1
    %15 = vsyncpa %s14, 0
    %16 = vsyncpa [#allocation6], 0
    %s17 = scalar_lea.sflag [#allocation6], 1
    %18 = vsyncpa %s17, 0
    %19 = vsyncpa [#allocation11], 0
    %s20 = scalar_lea.sflag [#allocation11], 1
    %21 = vsyncpa %s20, 0
    loop: start=0, step=1, limit=4
    $region2: #{tpu_custom_call.1} parent=1 // loop_pre_header
      _
    $region3: #{tpu_custom_call.1} parent=1 // loop_header
      %s23 = sphi 0, %s27
      %p24 = scmp.ge.s32.totalorder %s23, 4
      %s30 = sphi 0, %s42
      %s31 = sphi 0, %s38
      %s32 = sphi 0, %s30
      %s33 = sphi 0, %s31
      %s34 = sphi 0, %s32
      %s35 = sphi 0, %s33
      %s47 = sphi 0, %s49
      %s50 = sphi 0, %s47
      %s51 = sphi 0, %s50
      %s67 = sphi 0, %s51
      %s73 = sphi 0, %s75
      %s76 = sphi 0, %s73
      %s77 = sphi 0, %s76
      %s93 = sphi 0, %s77
      %s99 = sphi 0, %s101
      %s102 = sphi 0, %s99
      %s103 = sphi 0, %s102
      %s119 = sphi 0, %s103
      %s127 = sphi 0, %s129
      %s130 = sphi 0, %s127
      %s131 = sphi 0, %s130
      %s147 = sphi 0, %s131
      %s153 = sphi 0, %s155
      %s156 = sphi 0, %s153
      %s157 = sphi 0, %s156
      %s173 = sphi 0, %s157
    $region4: #{tpu_custom_call.1} parent=1 // loop_header_branch
      %26 = sbr.rel (%p24) target = $region8
    $region5: #{tpu_custom_call.1} parent=1 // loop_body
      %s28 = ssub.s32 %s23, 1
      %s29 = ssub.s32 %s23, 2
      %s36 = sadd.s32 1, %s31
      %p37 = scmp.ge.s32.totalorder %s36, 1
      %s38 = scalar_select %p37, 0, %s36
      %s39 = sadd.s32 1, %s30
      %s40 = scalar_select %p37, %s39, %s30
      %p41 = scmp.ge.s32.totalorder %s40, 2
      %s42 = scalar_select %p41, 0, %s40
      %s43 = ssub.s32 %s30, %s42
      %s44 = ssub.s32 %s31, %s38
      %s45 = sor.u32 %s43, %s44
      %p46 = scmp.eq.s32.totalorder %s45, 0
      %s48 = sadd.s32 %s47, 1
      %s49 = scalar_select %p46, %s47, %s48
      %p52 = pneg %p46
      %p53 = scmp.eq.s32.totalorder %s23, 1
      %p54 = por %p52, %p53
      %p55 = scmp.ne.s32.totalorder %s47, %s50
      %p56 = scmp.eq.s32.totalorder %s23, 0
      %p57 = por %p55, %p56
      %p58 = scmp.ne.s32.totalorder %s47, %s50
      %p59 = scmp.eq.s32.totalorder %s28, 1
      %p60 = por %p58, %p59
      %p61 = scmp.ne.s32.totalorder %s50, %s51
      %p62 = scmp.eq.s32.totalorder %s28, 0
      %p63 = por %p61, %p62
      %p64 = scmp.ne.s32.totalorder %s50, %s51
      %p65 = scmp.eq.s32.totalorder %s29, 1
      %p66 = por %p64, %p65
      %p68 = scmp.ne.s32.totalorder %s51, %s67
      %p69 = scmp.eq.s32.totalorder %s29, 0
      %p70 = por %p68, %p69
      %s71 = ssub.s32 %s30, %s42
      %p72 = scmp.eq.s32.totalorder %s71, 0
      %s74 = sadd.s32 %s73, 1
      %s75 = scalar_select %p72, %s73, %s74
      %p78 = pneg %p72
      %p79 = scmp.eq.s32.totalorder %s23, 1
      %p80 = por %p78, %p79
      %p81 = scmp.ne.s32.totalorder %s73, %s76
      %p82 = scmp.eq.s32.totalorder %s23, 0
      %p83 = por %p81, %p82
      %p84 = scmp.ne.s32.totalorder %s73, %s76
      %p85 = scmp.eq.s32.totalorder %s28, 1
      %p86 = por %p84, %p85
      %p87 = scmp.ne.s32.totalorder %s76, %s77
      %p88 = scmp.eq.s32.totalorder %s28, 0
      %p89 = por %p87, %p88
      %p90 = scmp.ne.s32.totalorder %s76, %s77
      %p91 = scmp.eq.s32.totalorder %s29, 1
      %p92 = por %p90, %p91
      %p94 = scmp.ne.s32.totalorder %s77, %s93
      %p95 = scmp.eq.s32.totalorder %s29, 0
      %p96 = por %p94, %p95
      %s97 = ssub.s32 %s30, %s42
      %p98 = scmp.eq.s32.totalorder %s97, 0
      %s100 = sadd.s32 %s99, 1
      %s101 = scalar_select %p98, %s99, %s100
      %p104 = pneg %p98
      %p105 = scmp.eq.s32.totalorder %s23, 1
      %p106 = por %p104, %p105
      %p107 = scmp.ne.s32.totalorder %s99, %s102
      %p108 = scmp.eq.s32.totalorder %s23, 0
      %p109 = por %p107, %p108
      %p110 = scmp.ne.s32.totalorder %s99, %s102
      %p111 = scmp.eq.s32.totalorder %s28, 1
      %p112 = por %p110, %p111
      %p113 = scmp.ne.s32.totalorder %s102, %s103
      %p114 = scmp.eq.s32.totalorder %s28, 0
      %p115 = por %p113, %p114
      %p116 = scmp.ne.s32.totalorder %s102, %s103
      %p117 = scmp.eq.s32.totalorder %s29, 1
      %p118 = por %p116, %p117
      %p120 = scmp.ne.s32.totalorder %s103, %s119
      %p121 = scmp.eq.s32.totalorder %s29, 0
      %p122 = por %p120, %p121
      %s123 = ssub.s32 %s30, %s42
      %s124 = ssub.s32 %s31, %s38
      %s125 = sor.u32 %s123, %s124
      %p126 = scmp.eq.s32.totalorder %s125, 0
      %s128 = sadd.s32 %s127, 1
      %s129 = scalar_select %p126, %s127, %s128
      %p132 = pneg %p126
      %p133 = scmp.eq.s32.totalorder %s23, 1
      %p134 = por %p132, %p133
      %p135 = scmp.ne.s32.totalorder %s127, %s130
      %p136 = scmp.eq.s32.totalorder %s23, 0
      %p137 = por %p135, %p136
      %p138 = scmp.ne.s32.totalorder %s127, %s130
      %p139 = scmp.eq.s32.totalorder %s28, 1
      %p140 = por %p138, %p139
      %p141 = scmp.ne.s32.totalorder %s130, %s131
      %p142 = scmp.eq.s32.totalorder %s28, 0
      %p143 = por %p141, %p142
      %p144 = scmp.ne.s32.totalorder %s130, %s131
      %p145 = scmp.eq.s32.totalorder %s29, 1
      %p146 = por %p144, %p145
      %p148 = scmp.ne.s32.totalorder %s131, %s147
      %p149 = scmp.eq.s32.totalorder %s29, 0
      %p150 = por %p148, %p149
      %s151 = ssub.s32 %s30, %s42
      %p152 = scmp.eq.s32.totalorder %s151, 0
      %s154 = sadd.s32 %s153, 1
      %s155 = scalar_select %p152, %s153, %s154
      %p158 = pneg %p152
      %p159 = scmp.eq.s32.totalorder %s23, 1
      %p160 = por %p158, %p159
      %p161 = scmp.ne.s32.totalorder %s153, %s156
      %p162 = scmp.eq.s32.totalorder %s23, 0
      %p163 = por %p161, %p162
      %p164 = scmp.ne.s32.totalorder %s153, %s156
      %p165 = scmp.eq.s32.totalorder %s28, 1
      %p166 = por %p164, %p165
      %p167 = scmp.ne.s32.totalorder %s156, %s157
      %p168 = scmp.eq.s32.totalorder %s28, 0
      %p169 = por %p167, %p168
      %p170 = scmp.ne.s32.totalorder %s156, %s157
      %p171 = scmp.eq.s32.totalorder %s29, 1
      %p172 = por %p170, %p171
      %p174 = scmp.ne.s32.totalorder %s157, %s173
      %p175 = scmp.eq.s32.totalorder %s29, 0
      %p176 = por %p174, %p175
      %p177 = scmp.le.s32.totalorder 1, %s23
      %p178 = scmp.lt.s32.totalorder %s23, 3
      %p179 = pnand %p177, %p178
      %p180 = pneg %p179
      // Predicated region
      $region9: #{tpu_custom_call.1} parent=5 // pred_check
        _
      $region10: #{tpu_custom_call.1} parent=5 // pred_check_branch
        %182 = sbr.rel (%p179) target = $region12
      $region11: #{tpu_custom_call.1} parent=5 // pred_region
        %s183 = ssub.s32 %s23, 1
      $region12: #{tpu_custom_call.1} parent=5 // pred_fallthru
        _
      %p184 = scmp.lt.s32.totalorder %s23, 2
      // Predicated region
      $region13: #{tpu_custom_call.1} parent=5 // pred_check
        %p185 = pneg %p184
      $region14: #{tpu_custom_call.1} parent=5 // pred_check_branch
        %187 = sbr.rel (%p185) target = $region16
      $region15: #{tpu_custom_call.1} parent=5 // pred_region
        // Predicated region
        $region17: #{tpu_custom_call.1} parent=15 // pred_check
          %p188 = pneg %p57
        $region18: #{tpu_custom_call.1} parent=15 // pred_check_branch
          %190 = sbr.rel (%p188) target = $region20
        $region19: #{tpu_custom_call.1} parent=15 // pred_region
          %s191 = sand.u32 %s47, 1
          %s192 = scalar_lea.sflag [#allocation5], %s191
          %s193 = sand.u32 %s47, 1
          %s194 = smul.addr %s193, 8
          %s195 = scalar_lea.vmem [#allocation4], %s194
          %s196 = smul.u32 2, %s31
          %198 = vsyncadd %s192, 0
          %s199 = smul.addr %s30, 2
          %s200 = sadd.s32 %s196, %s199
          %s201 = smul.addr %s200, 4
          %s202 = scalar_lea.hbm %s0, %s201
          %s204 = sshll.u32 %s202, 4
          %s205 = int_to_ptr.hbm [resolvable:$true] %s204
          %s206 = sshll.u32 %s195, 4
          %s207 = int_to_ptr.vmem [resolvable:$true] %s206
          %209 = dma.hbm_to_vmem [thread:$0]  %s205, 128, %s207, %s192
        $region20: #{tpu_custom_call.1} parent=15 // pred_fallthru
          _
        // Predicated region
        $region21: #{tpu_custom_call.1} parent=15 // pred_check
          %p210 = pneg %p83
        $region22: #{tpu_custom_call.1} parent=15 // pred_check_branch
          %212 = sbr.rel (%p210) target = $region24
        $region23: #{tpu_custom_call.1} parent=15 // pred_region
          %s213 = sand.u32 %s73, 1
          %s214 = scalar_lea.sflag [#allocation8], %s213
          %s215 = sand.u32 %s73, 1
          %s216 = scalar_lea.vmem [#allocation7], %s215
          %218 = vsyncadd %s214, 0
          %s219 = scalar_lea.hbm %s1, %s30
          %s221 = sshll.u32 %s219, 4
          %s222 = int_to_ptr.hbm [resolvable:$true] %s221
          %s223 = sshll.u32 %s216, 4
          %s224 = int_to_ptr.vmem [resolvable:$true] %s223
          %226 = dma.hbm_to_vmem [thread:$0]  %s222, 16, %s224, %s214
        $region24: #{tpu_custom_call.1} parent=15 // pred_fallthru
          _
      $region16: #{tpu_custom_call.1} parent=5 // pred_fallthru
        _
      %p227 = scmp.le.s32.totalorder 1, %s23
      %p228 = scmp.lt.s32.totalorder %s23, 3
      %p229 = pnand %p227, %p228
      %p230 = pneg %p229
      // Predicated region
      $region25: #{tpu_custom_call.1} parent=5 // pred_check
        _
      $region26: #{tpu_custom_call.1} parent=5 // pred_check_branch
        %232 = sbr.rel (%p229) target = $region28
      $region27: #{tpu_custom_call.1} parent=5 // pred_region
        %s233 = ssub.s32 %s23, 1
        %s234 = sand.u32 %s50, 1
        %s235 = scalar_lea.sflag [#allocation5], %s234
        %s236 = sand.u32 %s50, 1
        %s237 = smul.addr %s236, 8
        %s238 = scalar_lea.vmem [#allocation4], %s237
        // Predicated region
        $region29: #{tpu_custom_call.1} parent=27 // pred_check
          %p239 = pneg %p63
        $region30: #{tpu_custom_call.1} parent=27 // pred_check_branch
          %241 = sbr.rel (%p239) target = $region32
        $region31: #{tpu_custom_call.1} parent=27 // pred_region
          %243 = dma.done %s235, 128
        $region32: #{tpu_custom_call.1} parent=27 // pred_fallthru
          _
        %s244 = sand.u32 %s76, 1
        %s245 = scalar_lea.sflag [#allocation8], %s244
        %s246 = sand.u32 %s76, 1
        %s247 = scalar_lea.vmem [#allocation7], %s246
        // Predicated region
        $region33: #{tpu_custom_call.1} parent=27 // pred_check
          %p248 = pneg %p89
        $region34: #{tpu_custom_call.1} parent=27 // pred_check_branch
          %250 = sbr.rel (%p248) target = $region36
        $region35: #{tpu_custom_call.1} parent=27 // pred_region
          %252 = dma.done %s245, 16
        $region36: #{tpu_custom_call.1} parent=27 // pred_fallthru
          _
        %s253 = sand.u32 %s50, 1
        %s254 = scalar_lea.sflag [#allocation5], %s253
        %s255 = sand.u32 %s50, 1
        %s256 = smul.addr %s255, 8
        %s257 = scalar_lea.vmem [#allocation4], %s256
        %p258 = pneg %p63
        %p259 = pneg %p60
        %s260 = sand.u32 %s76, 1
        %s261 = scalar_lea.sflag [#allocation8], %s260
        %s262 = sand.u32 %s76, 1
        %s263 = scalar_lea.vmem [#allocation7], %s262
        %p264 = pneg %p89
        %p265 = pneg %p86
        %p266 = pneg %p115
        %p267 = pneg %p112
        %s268 = sand.u32 %s102, 1
        %s269 = scalar_lea.sflag [#allocation6], %s268
        %s270 = sand.u32 %s102, 1
        %s271 = scalar_lea.vmem [#allocation9], %s270
        %p272 = pneg %p143
        %p273 = pneg %p140
        %s274 = sand.u32 %s130, 1
        %s275 = scalar_lea.sflag [#allocation11], %s274
        %s276 = sand.u32 %s130, 1
        %s277 = smul.addr %s276, 2
        %s278 = scalar_lea.vmem [#allocation10], %s277
        %p279 = pneg %p169
        %p280 = pneg %p166
        %p281 = scmp.lt.s32.totalorder %s32, 1
        %s282 = scalar_select %p281, %s32, 1
        %s283 = scalar_lea.vmem %s4, %s282
        %s284 = smul.u32 2, %s33
        %s285 = smul.u32 2, %s33
        %p286 = scmp.lt.s32.totalorder %s32, 1
        %s287 = scalar_select %p286, %s32, 1
        %s288 = scalar_lea.vmem %s4, %s287
        %v289 = vld [vmem:[%s238] sm:$0xff]
        %v290 = vld [vmem:[%s247] sm:$0x1]
        %292 = vset.pattern.permute.xlu0 4
        %293 = vperm.xlu0 %292, %v290
        %v294 = vpop.permute.xlu0 %293
        %v296 = vperm.slane %v294, 0
        %298 = vst [vmem:[#allocation1] ss:$2 sm:$0xff] %v289
        %v299 = vld.sshfl [vmem:[#allocation1] sm:$0xff pattern:$0x75316420]
        %v300 = vld.sshfl [vmem:[#allocation1 + $0x8] sm:$0xff pattern:$0x75316420]
        %vm301 = vcmask 31744
        %v302 = vsel %vm301, %v290, 0
        %vm304 = vcmask 1043456
        %v305 = vsel %vm304, %v299, 0
        %v307 = vsel %vm304, %v300, 0
        %309 = vmatpush.msra.mxu0 0.0
        %310 = vmatpush.msra.mxu0 0.0
        %311 = vmatpush.msra.mxu0 0.0
        %312 = vmatpush.msra.mxu0 0.0
        %313 = vmatpush.msra.mxu0 0.0
        %314 = vmatpush.msra.mxu0 0.0
        %315 = vmatpush.msra.mxu0 0.0
        %316 = vmatpush.msra.mxu0 0.0
        %317 = vmatpush.msra.mxu0 0.0
        %318 = vmatpush.msra.mxu0 0.0
        %319 = vmatpush.msra.mxu0 0.0
        %320 = vmatpush.msra.mxu0 0.0
        %321 = vmatpush.msra.mxu0 0.0
        %322 = vmatpush.msra.mxu0 0.0
        %323 = vmatpush.msra.mxu0 0.0
        %324 = vmatpush.msra.mxu0 %v305
        %325 = vmatmul.f32.gmra.mxu0 %v302
        %v326 = vpop.f32.mrf.mxu0
        %v327 = vadd.f32 %v296, %v326
        %328 = vdwg.mxu0
        %329 = vmatpush.msra.mxu0 0.0
        %330 = vmatpush.msra.mxu0 0.0
        %331 = vmatpush.msra.mxu0 0.0
        %332 = vmatpush.msra.mxu0 0.0
        %333 = vmatpush.msra.mxu0 0.0
        %334 = vmatpush.msra.mxu0 0.0
        %335 = vmatpush.msra.mxu0 0.0
        %336 = vmatpush.msra.mxu0 0.0
        %337 = vmatpush.msra.mxu0 0.0
        %338 = vmatpush.msra.mxu0 0.0
        %339 = vmatpush.msra.mxu0 0.0
        %340 = vmatpush.msra.mxu0 0.0
        %341 = vmatpush.msra.mxu0 0.0
        %342 = vmatpush.msra.mxu0 0.0
        %343 = vmatpush.msra.mxu0 0.0
        %344 = vmatpush.msra.mxu0 %v307
        %345 = vmatmul.f32.gmra.mxu0 %v302
        %v346 = vpop.f32.mrf.mxu0
        %v347 = vadd.f32 %v296, %v346
        %348 = vdwg.mxu0
        %vm349 = vcmp.gt.f32.partialorder %v327, 20.0
        %vm350 = vcmp.gt.f32.partialorder %v347, 20.0
        %v351 = vmin.f32 %v327, 20.0
        %v352 = vmin.f32 %v347, 20.0
        %v353 = vmul.f32 %v351, 1.442695
        %v354 = vpow.pop %v353
        %v355 = vmul.f32 %v352, 1.442695
        %v356 = vpow.pop %v355
        %v357 = vadd.f32 %v354, 1.0
        %v358 = vlog2.pop %v357
        %v359 = vmul.f32 %v358, 0.6931472
        %v360 = vmul.f32 -0.5, %v354
        %v361 = vadd.f32 %v360, 1.0
        %v362 = vmul.f32 %v361, %v354
        %v363 = vand.u32 2147483647, %v354
        %vm364 = vcmp.lt.f32.partialorder %v363, 0.0004427343
        %v365 = vsel %vm364, %v362, %v359
        %v366 = vadd.f32 %v356, 1.0
        %v367 = vlog2.pop %v366
        %v368 = vmul.f32 %v367, 0.6931472
        %v369 = vmul.f32 -0.5, %v356
        %v370 = vadd.f32 %v369, 1.0
        %v371 = vmul.f32 %v370, %v356
        %v372 = vand.u32 2147483647, %v356
        %vm373 = vcmp.lt.f32.partialorder %v372, 0.0004427343
        %v374 = vsel %vm373, %v371, %v368
        %v375 = vsel %vm349, %v327, %v365
        %v376 = vsel %vm350, %v347, %v374
        %vm377 = vcmask 1040384
        %v378 = vsel %vm377, %v375, 0.0
        %v379 = vsel %vm377, %v376, 0.0
        %v380 = vadd.f32 %v378, %v379
        %381 = vadd.xlane.f32.xlu0 %v380
        %v382 = vpop.xlane.xlu0 %381
        %v383 = vadd.f32 %v382, 0.0001
        %v384 = vrcp.pop %v383
        %v385 = vmul.f32 %v383, %v384
        %v386 = vsub.f32 1.0, %v385
        %v387 = vmul.f32 %v384, %v386
        %v388 = vadd.f32 %v384, %v387
        %vm389 = vweird.f32 %v383
        %vm390 = vweird.f32 %v384
        %vm391 = vmor %vm389, %vm390
        %v392 = vsel %vm391, %v384, %v388
        %v393 = vand.u32 2147483647, %v383
        %vm394 = vcmp.eq.f32.partialorder %v393, 8.507059e+37
        %v395 = vand.u32 %v383, 2147483648
        %v396 = vor.u32 1.1754944e-38, %v395
        %v397 = vsel %vm394, %v396, %v392
        %v398 = vmul.f32 %v375, %v397
        %v399 = vmul.f32 %v376, %v397
        %v402 = vrot.slane %v399, 7
        %v403 = vsel %vm377, %v398, %v402
        %v405 = vlaneseq
        %vm406 = vcmp.ge.s32.totalorder %v405, 0
        %vm407 = vcmp.lt.s32.totalorder %v405, 256
        %vm408 = vmand %vm406, %vm407
        %409 = vst.msk [vmem:[%s278] sm:$0x3] %vm408, %v403
        %410 = vst [vmem:[#allocation1] ss:$2 sm:$0xff] %v289
        %v411 = vld.sshfl [vmem:[#allocation1] sm:$0xff pattern:$0x75316420]
        %v412 = vld.sshfl [vmem:[#allocation1 + $0x8] sm:$0xff pattern:$0x75316420]
        %415 = vmatpush.xpose.msra.mxu0 0.0
        %416 = vmatpush.xpose.msra.mxu0 0.0
        %417 = vmatpush.xpose.msra.mxu0 0.0
        %418 = vmatpush.xpose.msra.mxu0 0.0
        %419 = vmatpush.xpose.msra.mxu0 0.0
        %420 = vmatpush.xpose.msra.mxu0 0.0
        %421 = vmatpush.xpose.msra.mxu0 0.0
        %422 = vmatpush.xpose.msra.mxu0 0.0
        %423 = vmatpush.xpose.msra.mxu0 0.0
        %424 = vmatpush.xpose.msra.mxu0 0.0
        %425 = vmatpush.xpose.msra.mxu0 0.0
        %426 = vmatpush.xpose.msra.mxu0 0.0
        %427 = vmatpush.xpose.msra.mxu0 0.0
        %428 = vmatpush.xpose.msra.mxu0 0.0
        %429 = vmatpush.xpose.msra.mxu0 0.0
        %430 = vmatpush.xpose.msra.mxu0 %v411
        %431 = vmatmul.f32.gmra.mxu0 %v398
        %v432 = vpop.f32.mrf.mxu0
        %v433 = vadd.f32 0.0, %v432
        %434 = vdwg.mxu0
        %435 = vmatpush.xpose.msra.mxu0 0.0
        %436 = vmatpush.xpose.msra.mxu0 0.0
        %437 = vmatpush.xpose.msra.mxu0 0.0
        %438 = vmatpush.xpose.msra.mxu0 0.0
        %439 = vmatpush.xpose.msra.mxu0 0.0
        %440 = vmatpush.xpose.msra.mxu0 0.0
        %441 = vmatpush.xpose.msra.mxu0 0.0
        %442 = vmatpush.xpose.msra.mxu0 0.0
        %443 = vmatpush.xpose.msra.mxu0 0.0
        %444 = vmatpush.xpose.msra.mxu0 0.0
        %445 = vmatpush.xpose.msra.mxu0 0.0
        %446 = vmatpush.xpose.msra.mxu0 0.0
        %447 = vmatpush.xpose.msra.mxu0 0.0
        %448 = vmatpush.xpose.msra.mxu0 0.0
        %449 = vmatpush.xpose.msra.mxu0 0.0
        %450 = vmatpush.xpose.msra.mxu0 %v412
        %451 = vmatmul.f32.gmra.mxu0 %v399
        %v452 = vpop.f32.mrf.mxu0
        %v453 = vadd.f32 %v433, %v452
        %454 = vdwg.mxu0
        %vm455 = vcmask 24576
        %456 = vst.msk [vmem:[%s271] sm:$0x1] %vm455, %v453
        %vm457 = vcmask 0
        %458 = vst.msk [vmem:[%s288] sm:$0x1] %vm457, %v383
        %s459 = sand.u32 %s102, 1
        %s460 = scalar_lea.sflag [#allocation6], %s459
        %s461 = sand.u32 %s102, 1
        %s462 = scalar_lea.vmem [#allocation9], %s461
        %s463 = sand.u32 %s130, 1
        %s464 = scalar_lea.sflag [#allocation11], %s463
        %s465 = sand.u32 %s130, 1
        %s466 = smul.addr %s465, 2
        %s467 = scalar_lea.vmem [#allocation10], %s466
        %p468 = scmp.lt.s32.totalorder %s32, 1
        %s469 = scalar_select %p468, %s32, 1
        %s470 = scalar_lea.vmem %s4, %s469
        // Predicated region
        $region37: #{tpu_custom_call.1} parent=27 // pred_check
          %p471 = pneg %p112
        $region38: #{tpu_custom_call.1} parent=27 // pred_check_branch
          %473 = sbr.rel (%p471) target = $region40
        $region39: #{tpu_custom_call.1} parent=27 // pred_region
          %475 = vsyncadd %s460, 0
          %s476 = scalar_lea.hbm %s2, %s32
          %s478 = sshll.u32 %s462, 4
          %s479 = int_to_ptr.vmem [resolvable:$true] %s478
          %s480 = sshll.u32 %s476, 4
          %s481 = int_to_ptr.hbm [resolvable:$true] %s480
          %483 = dma.vmem_to_hbm [thread:$0]  %s479, 16, %s481, %s460
        $region40: #{tpu_custom_call.1} parent=27 // pred_fallthru
          _
        // Predicated region
        $region41: #{tpu_custom_call.1} parent=27 // pred_check
          %p484 = pneg %p140
        $region42: #{tpu_custom_call.1} parent=27 // pred_check_branch
          %486 = sbr.rel (%p484) target = $region44
        $region43: #{tpu_custom_call.1} parent=27 // pred_region
          %s487 = smul.u32 2, %s33
          %489 = vsyncadd %s464, 0
          %s490 = smul.addr %s32, 2
          %s491 = sadd.s32 %s487, %s490
          %s492 = scalar_lea.hbm %s3, %s491
          %s494 = sshll.u32 %s467, 4
          %s495 = int_to_ptr.vmem [resolvable:$true] %s494
          %s496 = sshll.u32 %s492, 4
          %s497 = int_to_ptr.hbm [resolvable:$true] %s496
          %499 = dma.vmem_to_hbm [thread:$0]  %s495, 32, %s497, %s464
        $region44: #{tpu_custom_call.1} parent=27 // pred_fallthru
          _
        // Predicated region
        $region45: #{tpu_custom_call.1} parent=27 // pred_check
          %p500 = pneg %p166
        $region46: #{tpu_custom_call.1} parent=27 // pred_check_branch
          %502 = sbr.rel (%p500) target = $region48
        $region47: #{tpu_custom_call.1} parent=27 // pred_region
          _
        $region48: #{tpu_custom_call.1} parent=27 // pred_fallthru
          _
      $region28: #{tpu_custom_call.1} parent=5 // pred_fallthru
        _
      %p503 = scmp.le.s32.totalorder 2, %s23
      // Predicated region
      $region49: #{tpu_custom_call.1} parent=5 // pred_check
        %p504 = pneg %p503
      $region50: #{tpu_custom_call.1} parent=5 // pred_check_branch
        %506 = sbr.rel (%p504) target = $region52
      $region51: #{tpu_custom_call.1} parent=5 // pred_region
        %s507 = ssub.s32 %s23, 2
        // Predicated region
        $region53: #{tpu_custom_call.1} parent=51 // pred_check
          %p508 = pneg %p118
        $region54: #{tpu_custom_call.1} parent=51 // pred_check_branch
          %510 = sbr.rel (%p508) target = $region56
        $region55: #{tpu_custom_call.1} parent=51 // pred_region
          %s511 = sand.u32 %s103, 1
          %s512 = scalar_lea.sflag [#allocation6], %s511
          %s513 = sand.u32 %s103, 1
          %s514 = scalar_lea.vmem [#allocation9], %s513
          %516 = dma.done %s512, 16
        $region56: #{tpu_custom_call.1} parent=51 // pred_fallthru
          _
        // Predicated region
        $region57: #{tpu_custom_call.1} parent=51 // pred_check
          %p517 = pneg %p146
        $region58: #{tpu_custom_call.1} parent=51 // pred_check_branch
          %519 = sbr.rel (%p517) target = $region60
        $region59: #{tpu_custom_call.1} parent=51 // pred_region
          %s520 = sand.u32 %s131, 1
          %s521 = scalar_lea.sflag [#allocation11], %s520
          %s522 = sand.u32 %s131, 1
          %s523 = smul.addr %s522, 2
          %s524 = scalar_lea.vmem [#allocation10], %s523
          %526 = dma.done %s521, 32
        $region60: #{tpu_custom_call.1} parent=51 // pred_fallthru
          _
        // Predicated region
        $region61: #{tpu_custom_call.1} parent=51 // pred_check
          %p527 = pneg %p172
        $region62: #{tpu_custom_call.1} parent=51 // pred_check_branch
          %529 = sbr.rel (%p527) target = $region64
        $region63: #{tpu_custom_call.1} parent=51 // pred_region
          %p530 = scmp.lt.s32.totalorder %s34, 1
          %s531 = scalar_select %p530, %s34, 1
          %s532 = scalar_lea.vmem %s4, %s531
        $region64: #{tpu_custom_call.1} parent=51 // pred_fallthru
          _
      $region52: #{tpu_custom_call.1} parent=5 // pred_fallthru
        _
    $region6: #{tpu_custom_call.1} parent=1 // loop_footer
      %s27 = sadd.s32 1, %s23
    $region7: #{tpu_custom_call.1} parent=1 // loop_footer_branch
      %22 = sbr.rel target = $region3
    $region8: #{tpu_custom_call.1} parent=1 // loop_exit
      _
    %533 = vsyncpa [#allocation5], 1
    %s534 = scalar_lea.sflag [#allocation5], 1
    %535 = vsyncpa %s534, 1
    %536 = vsyncpa [#allocation8], 1
    %s537 = scalar_lea.sflag [#allocation8], 1
    %538 = vsyncpa %s537, 1
    %539 = vsyncpa [#allocation6], 1
    %s540 = scalar_lea.sflag [#allocation6], 1
    %541 = vsyncpa %s540, 1
    %542 = vsyncpa [#allocation11], 1
    %s543 = scalar_lea.sflag [#allocation11], 1
    %544 = vsyncpa %s543, 1

</llo_original>
